<compile_context>
chip_gen: v6e
topology: v6e:2x2x1
jax: 0.10.0
libtpu: 0.0.40
codegen_flags: <defaults>
</compile_context>

<pallas_src>
import jax
import jax.numpy as jnp
from jax.experimental import pallas as pl
from jax.experimental.pallas import tpu as pltpu


def _cnn_encoder_kernel(x_ref, w_ref, b_ref, m_ref, out_ref):
    # x_ref  : (B_TILE, T+K-1, C_in)   bf16  causally left-padded activations
    # w_ref  : (K*C_in, C_out_pad)     bf16  flattened conv weights
    # b_ref  : (1, C_out_pad)          f32   conv bias (lane-padded)
    # m_ref  : (B_TILE, 1, T)          f32   mask[b, t] / sum_t mask[b, t]
    # out_ref: (B_TILE, 1, C_out_pad)  f32   pooled output
    b_tile, t_pad, c_in = x_ref.shape
    kc_in = w_ref.shape[0]
    k = kc_in // c_in
    t = t_pad - (k - 1)

    # Build the im2col slab in VMEM from K static shifted time-slices (no HBM dup).
    slab = jnp.concatenate([x_ref[:, j:j + t, :] for j in range(k)], axis=-1)
    slab = slab.reshape(b_tile * t, kc_in)                      # (B_TILE*T, K*C_in)

    # Fused K-tap causal conv: one MXU dot with the full K*C_in contraction.
    ct = jnp.dot(slab, w_ref[...], preferred_element_type=jnp.float32)
    # bf16 tanh (EUP) -- on v5e (no bf16 EUP) drop the .astype for an f32 tanh.
    act = jnp.tanh((ct + b_ref[...]).astype(jnp.bfloat16))      # (B_TILE*T, C_out_pad)
    act = act.reshape(b_tile, t, -1)                            # (B_TILE, T, C_out_pad)

    # Fused masked mean over time: tiny batched T-contraction dot; the 1/denominator
    # is already folded into m_ref.  (A fully-masked row yields inf/NaN, matching
    # the PyTorch module's behavior.)
    out_ref[...] = jnp.einsum("but,bto->buo",
                              m_ref[...].astype(jnp.bfloat16), act,
                              preferred_element_type=jnp.float32)


def cnn_encoder_forward(x_ncw, mask, weight_oik, bias, *, filter_width, b_tile=1):
    """x_ncw: (B, C_in, T) float32 (PyTorch NCW); mask: (B, T); weight: (C_out, C_in, K)."""
    # TODO(synk): return_average=False branch (sequential mask-gated "last hidden"
    # scan over time) is not implemented; only the default averaging path is translated.
    B, C_in, T = x_ncw.shape
    C_out, _, K = weight_oik.shape
    assert K == filter_width
    assert B % b_tile == 0

    LANE = 128
    C_out_pad = ((C_out + LANE - 1) // LANE) * LANE

    # ---- layout plumbing (glue, not the hot path) ----
    # Causal left pad in time; ship only (B, T+K-1, C_in) -- no im2col duplication.
    x_ntc = jnp.transpose(x_ncw, (0, 2, 1))                           # (B, T, C_in)
    x_pad = jnp.pad(x_ntc, ((0, 0), (K - 1, 0), (0, 0))).astype(jnp.bfloat16)

    # Weights flattened so w_flat[k*C_in + c, o] = weight[o, c, k]; lane-pad C_out.
    w_flat = jnp.transpose(weight_oik, (2, 1, 0)).reshape(K * C_in, C_out)
    w_flat = jnp.pad(w_flat, ((0, 0), (0, C_out_pad - C_out))).astype(jnp.bfloat16)
    b_2d = jnp.pad(bias, (0, C_out_pad - C_out)).reshape(1, C_out_pad).astype(jnp.float32)

    # mask_scaled[b, t] = mask[b, t] / sum_t mask[b, t]  (inf/NaN if fully masked,
    # matching PyTorch).  Shaped (B, 1, T) so per-batch-tile blocks obey (8,128) rules.
    denom = jnp.sum(mask, axis=1, keepdims=True)
    mask_scaled = (mask.astype(jnp.float32) / denom).reshape(B, 1, T)

    grid = (B // b_tile,)
    out = pl.pallas_call(
        _cnn_encoder_kernel,
        out_shape=jax.ShapeDtypeStruct((B, 1, C_out_pad), jnp.float32),
        grid=grid,
        in_specs=[
            pl.BlockSpec((b_tile, T + K - 1, C_in), lambda i: (i, 0, 0)),  # activations
            pl.BlockSpec((K * C_in, C_out_pad), lambda i: (0, 0)),         # weights
            pl.BlockSpec((1, C_out_pad), lambda i: (0, 0)),                # bias
            pl.BlockSpec((b_tile, 1, T), lambda i: (i, 0, 0)),             # mask/denom
        ],
        out_specs=pl.BlockSpec((b_tile, 1, C_out_pad), lambda i: (i, 0, 0)),
        compiler_params=pltpu.CompilerParams(
            dimension_semantics=("parallel",),        # shards across v7x's 2 TCs
            vmem_limit_bytes=32 * 1024 * 1024,        # safe on v5e/v6e/v7x
        ),
    )(x_pad, w_flat, b_2d, mask_scaled)

    return out.reshape(B, C_out_pad)[:, :C_out]


def _reference_forward(x_ncw, mask, weight_oik, bias, filter_width):
    """Pure-JAX f32 reference mirroring the PyTorch forward (for correctness check)."""
    B, C_in, T = x_ncw.shape
    C_out, _, K = weight_oik.shape
    x_pad = jnp.pad(x_ncw, ((0, 0), (0, 0), (K - 1, 0)))              # causal left pad
    ct = jnp.zeros((B, C_out, T), jnp.float32)
    for k in range(K):
        ct = ct + jnp.einsum("oc,bct->bot", weight_oik[:, :, k], x_pad[:, :, k:k + T])
    ct = ct + bias[None, :, None]
    out = jnp.tanh(ct)
    masked = out * mask[:, None, :]
    return jnp.sum(masked, axis=2) / jnp.sum(mask, axis=1)[:, None]


if __name__ == "__main__":
    # Small shapes consistent with the module: batch=2, input_dim=4, seq=16,
    # output_dim=32, filter_width=3.
    B, C_in, T = 2, 4, 16
    C_out, K = 32, 3

    key = jax.random.PRNGKey(0)
    kx, kw, kb = jax.random.split(key, 3)

    x = jax.random.normal(kx, (B, C_in, T), dtype=jnp.float32)        # NCW like PyTorch
    weight = 0.1 * jax.random.normal(kw, (C_out, C_in, K), dtype=jnp.float32)
    bias = 0.1 * jax.random.normal(kb, (C_out,), dtype=jnp.float32)
    # Binary mask: batch 0 fully valid, batch 1 has trailing padding.
    mask = jnp.stack([
        jnp.ones((T,), jnp.float32),
        jnp.concatenate([jnp.ones((10,), jnp.float32), jnp.zeros((T - 10,), jnp.float32)]),
    ], axis=0)

    out = cnn_encoder_forward(x, mask, weight, bias, filter_width=K, b_tile=1)
    out = jax.block_until_ready(out)

    ref = _reference_forward(x, mask, weight, bias, K)
    # Tolerance relaxed for bf16 matmul inputs + bf16 tanh (f32 accumulation kept).
    if not jnp.allclose(out, ref, atol=2e-2, rtol=2e-2):
        raise AssertionError("Pallas CNNEncoder output mismatch vs reference")

    print("KERNEL_OK")
</pallas_src>

<mosaic_0001>
module attributes {stable_mosaic.version = 11 : i64} {
  func.func @_cnn_encoder_kernel(%arg0: i32, %arg1: memref<1x18x4xbf16, #tpu.memory_space<vmem>>, %arg2: memref<12x128xbf16, #tpu.memory_space<vmem>>, %arg3: memref<1x128xf32, #tpu.memory_space<vmem>>, %arg4: memref<1x1x16xf32, #tpu.memory_space<vmem>>, %arg5: memref<1x1x128xf32, #tpu.memory_space<vmem>>) attributes {dimension_semantics = [#tpu.dimension_semantics<parallel>], iteration_bounds = array<i64: 2>, scalar_prefetch = 0 : i64, scratch_operands = 0 : i64, tpu.core_type = #tpu.core_type<tc>, window_params = [{transform_indices = @transform_0, window_bounds = array<i64: 1, 18, 4>}, {pipeline_mode = #tpu.pipeline_mode<synchronous>, transform_indices = @transform_1, window_bounds = array<i64: 12, 128>}, {pipeline_mode = #tpu.pipeline_mode<synchronous>, transform_indices = @transform_2, window_bounds = array<i64: 1, 128>}, {transform_indices = @transform_3, window_bounds = array<i64: 1, 1, 16>}, {transform_indices = @transform_4, window_bounds = array<i64: 1, 1, 128>}]} {
    %c0 = arith.constant 0 : index
    %c0_0 = arith.constant 0 : index
    %c0_1 = arith.constant 0 : index
    %0 = vector.load %arg1[%c0, %c0_0, %c0_1] : memref<1x18x4xbf16, #tpu.memory_space<vmem>>, vector<1x16x4xbf16>
    %c0_2 = arith.constant 0 : index
    %c1 = arith.constant 1 : index
    %c0_3 = arith.constant 0 : index
    %1 = vector.load %arg1[%c0_2, %c1, %c0_3] : memref<1x18x4xbf16, #tpu.memory_space<vmem>>, vector<1x16x4xbf16>
    %c0_4 = arith.constant 0 : index
    %c2 = arith.constant 2 : index
    %c0_5 = arith.constant 0 : index
    %2 = vector.load %arg1[%c0_4, %c2, %c0_5] : memref<1x18x4xbf16, #tpu.memory_space<vmem>>, vector<1x16x4xbf16>
    %3 = tpu.concatenate %0, %1, %2 in 2 : vector<1x16x4xbf16>, vector<1x16x4xbf16>, vector<1x16x4xbf16> -> vector<1x16x12xbf16>
    %4 = vector.shape_cast %3 : vector<1x16x12xbf16> to vector<16x12xbf16>
    %c0_6 = arith.constant 0 : index
    %c0_7 = arith.constant 0 : index
    %5 = vector.load %arg2[%c0_6, %c0_7] : memref<12x128xbf16, #tpu.memory_space<vmem>>, vector<12x128xbf16>
    %cst = arith.constant dense<0.000000e+00> : vector<16x128xf32>
    %6 = tpu.matmul %4, %5, %cst {dimension_numbers = #tpu.dot_dimension_numbers<[1], [0], [0], [1], [0, 0, 1, 1], [], []>} : vector<16x12xbf16>, vector<12x128xbf16>, vector<16x128xf32> -> vector<16x128xf32>
    %c0_8 = arith.constant 0 : index
    %c0_9 = arith.constant 0 : index
    %7 = vector.load %arg3[%c0_8, %c0_9] : memref<1x128xf32, #tpu.memory_space<vmem>>, vector<1x128xf32>
    %8 = vector.broadcast %7 : vector<1x128xf32> to vector<16x128xf32>
    %9 = arith.addf %6, %8 : vector<16x128xf32>
    %10 = arith.truncf %9 : vector<16x128xf32> to vector<16x128xbf16>
    %11 = math.tanh %10 : vector<16x128xbf16>
    %12 = vector.shape_cast %11 : vector<16x128xbf16> to vector<1x16x128xbf16>
    %c0_10 = arith.constant 0 : index
    %c0_11 = arith.constant 0 : index
    %c0_12 = arith.constant 0 : index
    %13 = vector.load %arg4[%c0_10, %c0_11, %c0_12] : memref<1x1x16xf32, #tpu.memory_space<vmem>>, vector<1x1x16xf32>
    %14 = arith.truncf %13 : vector<1x1x16xf32> to vector<1x1x16xbf16>
    "tpu.trace_start"() <{level = 10 : i32, message = "but,bto->buo"}> : () -> ()
    %cst_13 = arith.constant dense<0.000000e+00> : vector<1x1x128xf32>
    %15 = tpu.matmul %14, %12, %cst_13 {dimension_numbers = #tpu.dot_dimension_numbers<[2], [1], [1], [2], [0, 0, 0, 1, 1, 2], [0], [0]>} : vector<1x1x16xbf16>, vector<1x16x128xbf16>, vector<1x1x128xf32> -> vector<1x1x128xf32>
    "tpu.trace_stop"() : () -> ()
    %c0_14 = arith.constant 0 : index
    %c0_15 = arith.constant 0 : index
    %c0_16 = arith.constant 0 : index
    %16 = vector.load %arg5[%c0_14, %c0_15, %c0_16] : memref<1x1x128xf32, #tpu.memory_space<vmem>>, vector<1x1x128xf32>
    tpu.vector_store %arg5[%c0_14, %c0_15, %c0_16], %15 {strides = array<i32>} : memref<1x1x128xf32, #tpu.memory_space<vmem>>, vector<1x1x128xf32>,
    return
  }
  func.func @transform_0(%arg0: i32) -> (i32, i32, i32) {
    %c0_i32 = arith.constant 0 : i32
    %c0_i32_0 = arith.constant 0 : i32
    %c0_i32_1 = arith.constant 0 : i32
    return %arg0, %c0_i32, %c0_i32_0 : i32, i32, i32
  }
  func.func @transform_1(%arg0: i32) -> (i32, i32) {
    %c0_i32 = arith.constant 0 : i32
    %c0_i32_0 = arith.constant 0 : i32
    %c0_i32_1 = arith.constant 0 : i32
    return %c0_i32, %c0_i32_0 : i32, i32
  }
  func.func @transform_2(%arg0: i32) -> (i32, i32) {
    %c0_i32 = arith.constant 0 : i32
    %c0_i32_0 = arith.constant 0 : i32
    %c0_i32_1 = arith.constant 0 : i32
    return %c0_i32, %c0_i32_0 : i32, i32
  }
  func.func @transform_3(%arg0: i32) -> (i32, i32, i32) {
    %c0_i32 = arith.constant 0 : i32
    %c0_i32_0 = arith.constant 0 : i32
    %c0_i32_1 = arith.constant 0 : i32
    return %arg0, %c0_i32, %c0_i32_0 : i32, i32, i32
  }
  func.func @transform_4(%arg0: i32) -> (i32, i32, i32) {
    %c0_i32 = arith.constant 0 : i32
    %c0_i32_0 = arith.constant 0 : i32
    %c0_i32_1 = arith.constant 0 : i32
    return %arg0, %c0_i32, %c0_i32_0 : i32, i32, i32
  }
}

</mosaic_0001>

<llo_original>
// kernel: tpu_custom_call.1
$region0: #{tpu_custom_call.1}
  #allocation0 [shape = 'u32[]', space=smem, size = 0x4, offset = 0x4, fixed_abs, tag = 'smem constant byte address 0x4 - core index']
  #allocation1 [shape = 'u32[144,128]{1,0:T(1,128)}', space=vmem, size = 0x12000, scoped, tag = 'internal scratch']
  %s0 = inlined_call_operand.vmem [shape: bf16[2,18,4], index: 0, kind: input, shape index: {}]
  %s1 = inlined_call_operand.vmem [shape: bf16[12,128], index: 1, kind: input, shape index: {}]
  %s2 = inlined_call_operand.vmem [shape: f32[1,128], index: 2, kind: input, shape index: {}]
  %s3 = inlined_call_operand.vmem [shape: f32[2,1,16], index: 3, kind: input, shape index: {}]
  %s4 = inlined_call_operand.hbm [shape: f32[2,1,128], index: 4, kind: output, shape index: {}]
  %s5 = sld [smem:[#allocation0]]
  $region49: #{tpu_custom_call.1} parent=0
    _
  %s7 = ssub.s32 1, %s5
  %s8 = scalar_select 0, %s7, %s5
  $region1: #{tpu_custom_call.1} parent=0
    #allocation2 [shape = 'u8[1024]{0}', space=vmem, size = 0x400, scoped, tag = 'output window, operand 0']
    #allocation3 [shape = 's32[2]{0}', space=sflag, size = 0x8, scoped, tag = 'scoped memory for tpu_custom_call.1']
    %9 = vsyncpa [#allocation3], 0
    %s10 = scalar_lea.sflag [#allocation3], 1
    %11 = vsyncpa %s10, 0
    loop: start=0, step=1, limit=4
    $region2: #{tpu_custom_call.1} parent=1 // loop_pre_header
      _
    $region3: #{tpu_custom_call.1} parent=1 // loop_header
      %s13 = sphi 0, %s17
      %p14 = scmp.ge.s32.totalorder %s13, 4
      %s23 = sphi 0, %s25
      %s26 = sphi 0, %s23
      %s27 = sphi 0, %s26
      %s43 = sphi 0, %s27
      %s47 = sphi 0, %s47
      %s49 = sphi 0, %s47
      %s50 = sphi 0, %s49
      %s64 = sphi 0, %s50
      %s68 = sphi 0, %s68
      %s70 = sphi 0, %s68
      %s71 = sphi 0, %s70
      %s85 = sphi 0, %s71
      %s91 = sphi 0, %s93
      %s94 = sphi 0, %s91
      %s95 = sphi 0, %s94
      %s111 = sphi 0, %s95
      %s117 = sphi 0, %s119
      %s120 = sphi 0, %s117
      %s121 = sphi 0, %s120
      %s137 = sphi 0, %s121
    $region4: #{tpu_custom_call.1} parent=1 // loop_header_branch
      %16 = sbr.rel (%p14) target = $region8
    $region5: #{tpu_custom_call.1} parent=1 // loop_body
      %s18 = ssub.s32 %s13, 1
      %s19 = ssub.s32 %s13, 2
      %s20 = sadd.s32 %s13, 1
      %s21 = ssub.s32 %s13, %s20
      %p22 = scmp.eq.s32.totalorder %s21, 0
      %s24 = sadd.s32 %s23, 1
      %s25 = scalar_select %p22, %s23, %s24
      %p28 = pneg %p22
      %p29 = scmp.eq.s32.totalorder %s13, 1
      %p30 = por %p28, %p29
      %p31 = scmp.ne.s32.totalorder %s23, %s26
      %p32 = scmp.eq.s32.totalorder %s13, 0
      %p33 = por %p31, %p32
      %p34 = scmp.ne.s32.totalorder %s23, %s26
      %p35 = scmp.eq.s32.totalorder %s18, 1
      %p36 = por %p34, %p35
      %p37 = scmp.ne.s32.totalorder %s26, %s27
      %p38 = scmp.eq.s32.totalorder %s18, 0
      %p39 = por %p37, %p38
      %p40 = scmp.ne.s32.totalorder %s26, %s27
      %p41 = scmp.eq.s32.totalorder %s19, 1
      %p42 = por %p40, %p41
      %p44 = scmp.ne.s32.totalorder %s27, %s43
      %p45 = scmp.eq.s32.totalorder %s19, 0
      %p46 = por %p44, %p45
      %s48 = sadd.s32 %s47, 1
      %p51 = scmp.eq.s32.totalorder %s13, 1
      %p52 = scmp.ne.s32.totalorder %s47, %s49
      %p53 = scmp.eq.s32.totalorder %s13, 0
      %p54 = por %p52, %p53
      %p55 = scmp.ne.s32.totalorder %s47, %s49
      %p56 = scmp.eq.s32.totalorder %s18, 1
      %p57 = por %p55, %p56
      %p58 = scmp.ne.s32.totalorder %s49, %s50
      %p59 = scmp.eq.s32.totalorder %s18, 0
      %p60 = por %p58, %p59
      %p61 = scmp.ne.s32.totalorder %s49, %s50
      %p62 = scmp.eq.s32.totalorder %s19, 1
      %p63 = por %p61, %p62
      %p65 = scmp.ne.s32.totalorder %s50, %s64
      %p66 = scmp.eq.s32.totalorder %s19, 0
      %p67 = por %p65, %p66
      %s69 = sadd.s32 %s68, 1
      %p72 = scmp.eq.s32.totalorder %s13, 1
      %p73 = scmp.ne.s32.totalorder %s68, %s70
      %p74 = scmp.eq.s32.totalorder %s13, 0
      %p75 = por %p73, %p74
      %p76 = scmp.ne.s32.totalorder %s68, %s70
      %p77 = scmp.eq.s32.totalorder %s18, 1
      %p78 = por %p76, %p77
      %p79 = scmp.ne.s32.totalorder %s70, %s71
      %p80 = scmp.eq.s32.totalorder %s18, 0
      %p81 = por %p79, %p80
      %p82 = scmp.ne.s32.totalorder %s70, %s71
      %p83 = scmp.eq.s32.totalorder %s19, 1
      %p84 = por %p82, %p83
      %p86 = scmp.ne.s32.totalorder %s71, %s85
      %p87 = scmp.eq.s32.totalorder %s19, 0
      %p88 = por %p86, %p87
      %s89 = ssub.s32 %s13, %s20
      %p90 = scmp.eq.s32.totalorder %s89, 0
      %s92 = sadd.s32 %s91, 1
      %s93 = scalar_select %p90, %s91, %s92
      %p96 = pneg %p90
      %p97 = scmp.eq.s32.totalorder %s13, 1
      %p98 = por %p96, %p97
      %p99 = scmp.ne.s32.totalorder %s91, %s94
      %p100 = scmp.eq.s32.totalorder %s13, 0
      %p101 = por %p99, %p100
      %p102 = scmp.ne.s32.totalorder %s91, %s94
      %p103 = scmp.eq.s32.totalorder %s18, 1
      %p104 = por %p102, %p103
      %p105 = scmp.ne.s32.totalorder %s94, %s95
      %p106 = scmp.eq.s32.totalorder %s18, 0
      %p107 = por %p105, %p106
      %p108 = scmp.ne.s32.totalorder %s94, %s95
      %p109 = scmp.eq.s32.totalorder %s19, 1
      %p110 = por %p108, %p109
      %p112 = scmp.ne.s32.totalorder %s95, %s111
      %p113 = scmp.eq.s32.totalorder %s19, 0
      %p114 = por %p112, %p113
      %s115 = ssub.s32 %s13, %s20
      %p116 = scmp.eq.s32.totalorder %s115, 0
      %s118 = sadd.s32 %s117, 1
      %s119 = scalar_select %p116, %s117, %s118
      %p122 = pneg %p116
      %p123 = scmp.eq.s32.totalorder %s13, 1
      %p124 = por %p122, %p123
      %p125 = scmp.ne.s32.totalorder %s117, %s120
      %p126 = scmp.eq.s32.totalorder %s13, 0
      %p127 = por %p125, %p126
      %p128 = scmp.ne.s32.totalorder %s117, %s120
      %p129 = scmp.eq.s32.totalorder %s18, 1
      %p130 = por %p128, %p129
      %p131 = scmp.ne.s32.totalorder %s120, %s121
      %p132 = scmp.eq.s32.totalorder %s18, 0
      %p133 = por %p131, %p132
      %p134 = scmp.ne.s32.totalorder %s120, %s121
      %p135 = scmp.eq.s32.totalorder %s19, 1
      %p136 = por %p134, %p135
      %p138 = scmp.ne.s32.totalorder %s121, %s137
      %p139 = scmp.eq.s32.totalorder %s19, 0
      %p140 = por %p138, %p139
      %p141 = scmp.le.s32.totalorder 1, %s13
      %p142 = scmp.lt.s32.totalorder %s13, 3
      %p143 = pnand %p141, %p142
      %p144 = pneg %p143
      // Predicated region
      $region9: #{tpu_custom_call.1} parent=5 // pred_check
        _
      $region10: #{tpu_custom_call.1} parent=5 // pred_check_branch
        %146 = sbr.rel (%p143) target = $region12
      $region11: #{tpu_custom_call.1} parent=5 // pred_region
        %s147 = ssub.s32 %s13, 1
        // Predicated region
        $region13: #{tpu_custom_call.1} parent=11 // pred_check
          %p148 = pneg %p60
        $region14: #{tpu_custom_call.1} parent=11 // pred_check_branch
          %150 = sbr.rel (%p148) target = $region16
        $region15: #{tpu_custom_call.1} parent=11 // pred_region
          _
        $region16: #{tpu_custom_call.1} parent=11 // pred_fallthru
          _
        // Predicated region
        $region17: #{tpu_custom_call.1} parent=11 // pred_check
          %p151 = pneg %p81
        $region18: #{tpu_custom_call.1} parent=11 // pred_check_branch
          %153 = sbr.rel (%p151) target = $region20
        $region19: #{tpu_custom_call.1} parent=11 // pred_region
          _
        $region20: #{tpu_custom_call.1} parent=11 // pred_fallthru
          _
      $region12: #{tpu_custom_call.1} parent=5 // pred_fallthru
        _
      %p154 = scmp.lt.s32.totalorder %s13, 2
      // Predicated region
      $region21: #{tpu_custom_call.1} parent=5 // pred_check
        %p155 = pneg %p154
      $region22: #{tpu_custom_call.1} parent=5 // pred_check_branch
        %157 = sbr.rel (%p155) target = $region24
      $region23: #{tpu_custom_call.1} parent=5 // pred_region
        // Predicated region
        $region25: #{tpu_custom_call.1} parent=23 // pred_check
          %p158 = pneg %p33
        $region26: #{tpu_custom_call.1} parent=23 // pred_check_branch
          %160 = sbr.rel (%p158) target = $region28
        $region27: #{tpu_custom_call.1} parent=23 // pred_region
          %p161 = scmp.lt.s32.totalorder %s13, 1
          %s162 = scalar_select %p161, %s13, 1
          %s163 = smul.addr %s162, 3
          %s164 = smul.addr %s163, 4
          %s165 = scalar_lea.vmem %s0, %s164
        $region28: #{tpu_custom_call.1} parent=23 // pred_fallthru
          _
        // Predicated region
        $region29: #{tpu_custom_call.1} parent=23 // pred_check
          %p166 = pneg %p101
        $region30: #{tpu_custom_call.1} parent=23 // pred_check_branch
          %168 = sbr.rel (%p166) target = $region32
        $region31: #{tpu_custom_call.1} parent=23 // pred_region
          %p169 = scmp.lt.s32.totalorder %s13, 1
          %s170 = scalar_select %p169, %s13, 1
          %s171 = scalar_lea.vmem %s3, %s170
        $region32: #{tpu_custom_call.1} parent=23 // pred_fallthru
          _
      $region24: #{tpu_custom_call.1} parent=5 // pred_fallthru
        _
      %p172 = scmp.le.s32.totalorder 1, %s13
      %p173 = scmp.lt.s32.totalorder %s13, 3
      %p174 = pnand %p172, %p173
      %p175 = pneg %p174
      // Predicated region
      $region33: #{tpu_custom_call.1} parent=5 // pred_check
        _
      $region34: #{tpu_custom_call.1} parent=5 // pred_check_branch
        %177 = sbr.rel (%p174) target = $region36
      $region35: #{tpu_custom_call.1} parent=5 // pred_region
        %s178 = ssub.s32 %s13, 1
        %p179 = scmp.lt.s32.totalorder %s18, 1
        %s180 = scalar_select %p179, %s18, 1
        %s181 = smul.addr %s180, 3
        %s182 = smul.addr %s181, 4
        %s183 = scalar_lea.vmem %s0, %s182
        %p184 = pneg %p39
        %p185 = pneg %p36
        %p186 = pneg %p60
        %p187 = pneg %p57
        %p188 = pneg %p81
        %p189 = pneg %p78
        %p190 = scmp.lt.s32.totalorder %s18, 1
        %s191 = scalar_select %p190, %s18, 1
        %s192 = scalar_lea.vmem %s3, %s191
        %p193 = pneg %p107
        %p194 = pneg %p104
        %p195 = pneg %p133
        %p196 = pneg %p130
        %s197 = sand.u32 %s120, 1
        %s198 = scalar_lea.sflag [#allocation3], %s197
        %s199 = sand.u32 %s120, 1
        %s200 = scalar_lea.vmem [#allocation2], %s199
        %p201 = scmp.lt.s32.totalorder %s18, 1
        %s202 = scalar_select %p201, %s18, 1
        %s203 = smul.addr %s202, 3
        %s204 = smul.addr %s203, 4
        %s205 = scalar_lea.vmem %s0, %s204
        %p206 = scmp.lt.s32.totalorder %s18, 1
        %s207 = scalar_select %p206, %s18, 1
        %s208 = scalar_lea.vmem %s3, %s207
        %v210 = vld [vmem:[%s205] sm:$0xf]
        %v211 = vld [vmem:[%s205 + $0x4] sm:$0xf]
        %v212 = vld [vmem:[%s205 + $0x8] sm:$0x1]
        %v213 = vld [vmem:[%s205] sm:$0xe]
        %v216 = vunpack.c.l.b16 %v210
        %v217 = vunpack.c.l.b16 %v211
        %v218 = vpack.c.b16 %v217, %v216
        %v220 = vunpack.c.l.b16 %v212
        %v221 = vpack.c.b16 %v220, %v220
        %vm222 = vsmask.f32 7424
        %v224 = vshrl.u32 %v218, 16
        %v226 = vshll.u32 %v218, 16
        %v228 = vrot.slane %v226, 1
        %v229 = vor.u32 %v224, %v228
        %v231 = vshll.u32 %v221, 16
        %v233 = vrot.slane %v231, 1
        %v234 = vsel %vm222, %v229, %v233
        %235 = vrot.lane.b32.xlu0 %v234, 4
        %v236 = vpop.permute.xlu0 %235
        %v238 = vunpack.c.l.b16 %v213
        %v239 = vpack.c.b16 %v217, %v238
        %vm240 = vcmask 1046528
        %v241 = vrot.slane %v239, 1
        %v242 = vrot.slane %v221, 1
        %v243 = vsel %vm240, %v241, %v242
        %244 = vrot.lane.b32.xlu0 %v243, 8
        %v245 = vpop.permute.xlu0 %244
        %vm246 = vcmask 31744
        %v248 = vsel %vm246, %v218, %v236
        %vm249 = vcmask 64512
        %v251 = vsel %vm249, %v248, %v245
        %v252 = vld [vmem:[%s1] sm:$0xf]
        %v253 = vld [vmem:[%s1 + $0x4] sm:$0x3]
        %v254 = vld [vmem:[%s2] sm:$0x1]
        %v256 = vlaneseq
        %v257 = vshrl.u32 %v256, 7
        %v258 = vsub.s32 0, %v257
        %v259 = vrot.slane %v254, %v258
        %v263 = vunpack.c.l.b16 %v252
        %v264 = vunpack.c.l.b16 %v253
        %v265 = vpack.c.b16 %v264, %v263
        %vm266 = vcmask 97280
        %v267 = vsel %vm266, %v251, 0
        %vm269 = vcmask 1045504
        %v271 = vsel %vm269, %v265, 0
        %273 = vmatprep.subr.bf16.mxu0 0
        %274 = vmatpush1.bf16.msra.mxu0 0
        %275 = vmatprep.subr.bf16.mxu0 0
        %276 = vmatpush1.bf16.msra.mxu0 0
        %277 = vmatprep.subr.bf16.mxu0 0
        %278 = vmatpush1.bf16.msra.mxu0 0
        %279 = vmatprep.subr.bf16.mxu0 0
        %280 = vmatpush1.bf16.msra.mxu0 0
        %281 = vmatprep.subr.bf16.mxu0 0
        %282 = vmatpush1.bf16.msra.mxu0 0
        %283 = vmatprep.subr.bf16.mxu0 0
        %284 = vmatpush1.bf16.msra.mxu0 0
        %285 = vmatprep.subr.bf16.mxu0 0
        %286 = vmatpush1.bf16.msra.mxu0 0
        %287 = vmatprep.subr.bf16.mxu0 0
        %288 = vmatpush1.bf16.msra.mxu0 %v271
        %289 = vmatprep.subr.bf16.mxu0 0
        %290 = vmatpush2.bf16.msra.mxu0 0
        %291 = vmatprep.subr.bf16.mxu0 0
        %292 = vmatpush2.bf16.msra.mxu0 0
        %293 = vmatprep.subr.bf16.mxu0 0
        %294 = vmatpush2.bf16.msra.mxu0 0
        %295 = vmatprep.subr.bf16.mxu0 0
        %296 = vmatpush2.bf16.msra.mxu0 0
        %297 = vmatprep.subr.bf16.mxu0 0
        %298 = vmatpush2.bf16.msra.mxu0 0
        %299 = vmatprep.subr.bf16.mxu0 0
        %300 = vmatpush2.bf16.msra.mxu0 0
        %301 = vmatprep.subr.bf16.mxu0 0
        %302 = vmatpush2.bf16.msra.mxu0 0
        %303 = vmatprep.subr.bf16.mxu0 0
        %304 = vmatpush2.bf16.msra.mxu0 0
        %305 = vmatprep.mubr.bf16.mxu0 0
        %306 = vmatmul.mubr.bf16.gmra.mxu0 %v267
        %v307 = vpop.f32.mrf.mxu0
        %v308 = vadd.f32 %v259, %v307
        %v309 = vpop.f32.mrf.mxu0
        %v310 = vpop.f32.mrf.mxu0
        %v311 = vadd.f32 %v259, %v310
        %v312 = vpop.f32.mrf.mxu0
        %313 = vdwg.mxu0
        %v314 = vpack.c.bf16 %v311, %v308
        %v315 = vtanh.bf16.pop %v314
        %v316 = vld [vmem:[%s208] sm:$0x1]
        %v317 = vpack.c.bf16 %v316, %v316
        %vm318 = vcmask 130048
        %v320 = vsel %vm318, %v317, 0
        %322 = vmatprep.subr.bf16.mxu0 0
        %323 = vmatpush1.bf16.msra.mxu0 0
        %324 = vmatprep.subr.bf16.mxu0 0
        %325 = vmatpush1.bf16.msra.mxu0 0
        %326 = vmatprep.subr.bf16.mxu0 0
        %327 = vmatpush1.bf16.msra.mxu0 0
        %328 = vmatprep.subr.bf16.mxu0 0
        %329 = vmatpush1.bf16.msra.mxu0 0
        %330 = vmatprep.subr.bf16.mxu0 0
        %331 = vmatpush1.bf16.msra.mxu0 0
        %332 = vmatprep.subr.bf16.mxu0 0
        %333 = vmatpush1.bf16.msra.mxu0 0
        %334 = vmatprep.subr.bf16.mxu0 0
        %335 = vmatpush1.bf16.msra.mxu0 0
        %336 = vmatprep.subr.bf16.mxu0 0
        %337 = vmatpush1.bf16.msra.mxu0 %v315
        %338 = vmatprep.subr.bf16.mxu0 0
        %339 = vmatpush2.bf16.msra.mxu0 0
        %340 = vmatprep.subr.bf16.mxu0 0
        %341 = vmatpush2.bf16.msra.mxu0 0
        %342 = vmatprep.subr.bf16.mxu0 0
        %343 = vmatpush2.bf16.msra.mxu0 0
        %344 = vmatprep.subr.bf16.mxu0 0
        %345 = vmatpush2.bf16.msra.mxu0 0
        %346 = vmatprep.subr.bf16.mxu0 0
        %347 = vmatpush2.bf16.msra.mxu0 0
        %348 = vmatprep.subr.bf16.mxu0 0
        %349 = vmatpush2.bf16.msra.mxu0 0
        %350 = vmatprep.subr.bf16.mxu0 0
        %351 = vmatpush2.bf16.msra.mxu0 0
        %352 = vmatprep.subr.bf16.mxu0 0
        %353 = vmatpush2.bf16.msra.mxu0 0
        %354 = vmatprep.mubr.bf16.mxu0 0
        %355 = vmatmul.mubr.bf16.gmra.mxu0 %v320
        %v356 = vpop.f32.mrf.mxu0
        %v357 = vadd.f32 0.0, %v356
        %v358 = vpop.f32.mrf.mxu0
        %v359 = vpop.f32.mrf.mxu0
        %v360 = vpop.f32.mrf.mxu0
        %361 = vdwg.mxu0
        %362 = vst [vmem:[%s200] sm:$0x1] %v357
        %s363 = sand.u32 %s120, 1
        %s364 = scalar_lea.sflag [#allocation3], %s363
        %s365 = sand.u32 %s120, 1
        %s366 = scalar_lea.vmem [#allocation2], %s365
        // Predicated region
        $region37: #{tpu_custom_call.1} parent=35 // pred_check
          %p367 = pneg %p130
        $region38: #{tpu_custom_call.1} parent=35 // pred_check_branch
          %369 = sbr.rel (%p367) target = $region40
        $region39: #{tpu_custom_call.1} parent=35 // pred_region
          %s371 = ssub.s32 16, 16
          %372 = vsyncadd %s364, %s371
          %s373 = smul.addr %s18, 16
          %s374 = scalar_lea.hbm %s4, %s373
          %s376 = sshll.u32 %s366, 4
          %s377 = int_to_ptr.vmem [resolvable:$true] %s376
          %379 = dma.vmem_to_hbm [thread:$0]  %s377, 16, %s374, %s364
        $region40: #{tpu_custom_call.1} parent=35 // pred_fallthru
          _
      $region36: #{tpu_custom_call.1} parent=5 // pred_fallthru
        _
      %p380 = scmp.le.s32.totalorder 2, %s13
      // Predicated region
      $region41: #{tpu_custom_call.1} parent=5 // pred_check
        %p381 = pneg %p380
      $region42: #{tpu_custom_call.1} parent=5 // pred_check_branch
        %383 = sbr.rel (%p381) target = $region44
      $region43: #{tpu_custom_call.1} parent=5 // pred_region
        %s384 = ssub.s32 %s13, 2
        // Predicated region
        $region45: #{tpu_custom_call.1} parent=43 // pred_check
          %p385 = pneg %p136
        $region46: #{tpu_custom_call.1} parent=43 // pred_check_branch
          %387 = sbr.rel (%p385) target = $region48
        $region47: #{tpu_custom_call.1} parent=43 // pred_region
          %s388 = sand.u32 %s121, 1
          %s389 = scalar_lea.sflag [#allocation3], %s388
          %s390 = sand.u32 %s121, 1
          %s391 = scalar_lea.vmem [#allocation2], %s390
          %392 = dma.done %s389, 16
        $region48: #{tpu_custom_call.1} parent=43 // pred_fallthru
          _
      $region44: #{tpu_custom_call.1} parent=5 // pred_fallthru
        _
    $region6: #{tpu_custom_call.1} parent=1 // loop_footer
      %s17 = sadd.s32 1, %s13
    $region7: #{tpu_custom_call.1} parent=1 // loop_footer_branch
      %12 = sbr.rel target = $region3
    $region8: #{tpu_custom_call.1} parent=1 // loop_exit
      _
    %393 = vsyncpa [#allocation3], 1
    %s394 = scalar_lea.sflag [#allocation3], 1
    %395 = vsyncpa %s394, 1

</llo_original>
